<compile_context>
chip_gen: v6e
topology: v6e:2x2x1
jax: 0.10.0
libtpu: 0.0.40
codegen_flags: <defaults>
</compile_context>

<pallas_src>
import jax
import jax.numpy as jnp
from jax import lax
from jax.experimental import pallas as pl
from jax.experimental.pallas import tpu as pltpu


def _round_up(v, m):
    return ((v + m - 1) // m) * m


def _ffn_partial(x_ref, w1_ref, b1_ref, w2_ref):
    """relu(x @ W1_chunk^T + b1_chunk) @ W2_chunk^T with f32 accumulation.

    Weights stay in PyTorch nn.Linear layout; both dots contract the shared
    (trailing) dim, which lowers to the MXU's native trans-B path (no wrapper
    transpose pass over the weights)."""
    h = lax.dot_general(
        x_ref[...], w1_ref[...],
        dimension_numbers=(((1,), (1,)), ((), ())),
        preferred_element_type=jnp.float32)
    h = jnp.maximum(h + b1_ref[...].astype(jnp.float32), 0.0)
    # TODO(synk): training-mode dropout mask would be applied to `h` here.
    return lax.dot_general(
        h.astype(w2_ref.dtype), w2_ref[...],
        dimension_numbers=(((1,), (1,)), ((), ())),
        preferred_element_type=jnp.float32)


def ffn_kernel_f32out(x_ref, w1_ref, b1_ref, w2_ref, b2_ref, o_ref):
    """f32 output: accumulate directly into o_ref (resident across the f axis)."""
    f = pl.program_id(1)

    @pl.when(f == 0)
    def _():
        o_ref[...] = jnp.zeros_like(o_ref)

    o_ref[...] += _ffn_partial(x_ref, w1_ref, b1_ref, w2_ref)

    @pl.when(f == pl.num_programs(1) - 1)
    def _():
        o_ref[...] += b2_ref[...].astype(jnp.float32)


def ffn_kernel_acc(x_ref, w1_ref, b1_ref, w2_ref, b2_ref, o_ref, acc_ref):
    """Non-f32 output: f32 VMEM scratch accumulator + final downcast."""
    f = pl.program_id(1)

    @pl.when(f == 0)
    def _():
        acc_ref[...] = jnp.zeros_like(acc_ref)

    acc_ref[...] += _ffn_partial(x_ref, w1_ref, b1_ref, w2_ref)

    @pl.when(f == pl.num_programs(1) - 1)
    def _():
        o_ref[...] = (acc_ref[...] + b2_ref[...].astype(jnp.float32)
                      ).astype(o_ref.dtype)


def _vmem_capacity_bytes():
    try:
        info = pltpu.get_tpu_info()
        cap = getattr(info, "vmem_capacity_bytes", None)
        if cap:
            return int(cap)
    except Exception:
        pass
    return 64 * 1024 * 1024  # conservative fallback (v7x-sized)


def _pick_tf(d_ff, d_model, tm, w_itemsize, tf_hint, budget):
    """Largest 128-aligned (prefer 256-aligned) divisor of d_ff whose working
    set (double-buffered weight chunks + x/out/acc/h) fits the VMEM budget."""
    def vmem_est(tf_):
        return (2 * 2 * tf_ * d_model * w_itemsize   # W1 + W2 chunks, double-buffered
                + 2 * tm * d_model * w_itemsize      # x tile, double-buffered
                + 2 * tm * d_model * 4               # out tile (f32 bound), double-buffered
                + tm * d_model * 4                   # f32 accumulator
                + tm * tf_ * 4                       # h intermediate
                + 4 * (tf_ + d_model) * 4)           # biases
    valid = [d for d in range(1, d_ff + 1)
             if d_ff % d == 0 and (d == d_ff or d % 128 == 0)]
    fitting = [d for d in valid if d <= tf_hint and vmem_est(d) <= budget]
    if not fitting:
        fitting = [min(valid)]  # best effort: smallest legal chunk
    # Prefer 256-aligned chunks (full pass of the 2x256x256 MXU on v6e/v7x), then larger.
    return max(fitting, key=lambda d: (d % 256 == 0 or d == d_ff, d))


def positionwise_ffn(x, w1, b1, w2, b2, *, tm=512, tf=2048):
    """x: (batch, seq, d_model); w1: (d_ff, d_model); b1: (d_ff,);
       w2: (d_model, d_ff); b2: (d_model,). Returns (batch, seq, d_model).

    Weights are consumed in their native (PyTorch nn.Linear) layout; pass bf16
    weights to use the bf16 MXU path (x is cast to the weight dtype once here,
    accumulation stays f32, output keeps x's original dtype)."""
    batch, seq, d_model = x.shape
    d_ff, d_model_w1 = w1.shape
    assert d_model_w1 == d_model and w2.shape == (d_model, d_ff)
    assert b1.shape == (d_ff,) and b2.shape == (d_model,)

    out_dtype = x.dtype
    n = batch * seq

    # ---- row tile: large by default, clamped for small inputs, and capped so
    # there are >= 2 row tiles when n permits (megacore / v7x 2-TC sharding).
    n8 = _round_up(n, 8)
    tm = max(8, min(tm, n8))
    if n8 >= 16:
        tm = min(tm, _round_up((n8 + 1) // 2, 8))
    n_pad = _round_up(n, tm)

    # ---- VMEM budget (generation-aware): ~96 MiB on v5e/v6e, ~48 MiB on v7x.
    vmem_cap = _vmem_capacity_bytes()
    vmem_limit = min(vmem_cap * 3 // 4, 100 * 1024 * 1024)

    # ---- d_ff tile: auto-selected divisor of d_ff under the VMEM budget.
    w_itemsize = jnp.dtype(w1.dtype).itemsize
    tf = _pick_tf(d_ff, d_model, tm, w_itemsize,
                  tf_hint=min(tf, d_ff), budget=int(vmem_limit * 0.9))
    nf = d_ff // tf

    # ---- wrapper-side prep: single cast of x to the weight dtype, bias reshape.
    x2 = x.reshape(n, d_model)
    if x2.dtype != w1.dtype:
        x2 = x2.astype(w1.dtype)
    if n_pad != n:
        x2 = jnp.pad(x2, ((0, n_pad - n), (0, 0)))
    b1r = b1.reshape(1, d_ff)
    b2r = b2.reshape(1, d_model)

    grid = (n_pad // tm, nf)

    # Serpentine over the d_ff axis on odd row tiles: the boundary weight chunk
    # is reused across the row-tile transition (Pallas skips the DMA when the
    # block index is unchanged). Chunk-sum is order-independent, so the
    # f==0 / f==last accumulator gates stay correct.
    if nf > 1:
        def f_idx(i, f):
            return jnp.where((i % 2) == 0, f, nf - 1 - f)
    else:
        def f_idx(i, f):
            return f

    # Advisory cost hint: weights are re-streamed once per row tile.
    n_row_tiles = n_pad // tm
    flops = 4 * n_pad * d_model * d_ff
    bytes_accessed = (x2.size * x2.dtype.itemsize
                      + n_pad * d_model * jnp.dtype(out_dtype).itemsize
                      + n_row_tiles * (w1.size * w1.dtype.itemsize
                                       + w2.size * w2.dtype.itemsize
                                       + b1r.size * b1r.dtype.itemsize
                                       + b2r.size * b2r.dtype.itemsize))

    if jnp.dtype(out_dtype) == jnp.dtype(jnp.float32):
        kernel = ffn_kernel_f32out
        scratch_shapes = []          # accumulate straight into o_ref
    else:
        kernel = ffn_kernel_acc
        scratch_shapes = [pltpu.VMEM((tm, d_model), jnp.float32)]

    out = pl.pallas_call(
        kernel,
        out_shape=jax.ShapeDtypeStruct((n_pad, d_model), out_dtype),
        grid_spec=pltpu.PrefetchScalarGridSpec(
            num_scalar_prefetch=0,
            grid=grid,
            in_specs=[
                pl.BlockSpec((tm, d_model), lambda i, f: (i, 0)),            # x rows
                pl.BlockSpec((tf, d_model), lambda i, f: (f_idx(i, f), 0)),  # W_1 chunk
                pl.BlockSpec((1, tf), lambda i, f: (0, f_idx(i, f))),        # b_1 chunk
                pl.BlockSpec((d_model, tf), lambda i, f: (0, f_idx(i, f))),  # W_2 chunk
                pl.BlockSpec((1, d_model), lambda i, f: (0, 0)),             # b_2
            ],
            out_specs=pl.BlockSpec((tm, d_model), lambda i, f: (i, 0)),
            scratch_shapes=scratch_shapes,
        ),
        compiler_params=pltpu.CompilerParams(
            dimension_semantics=("parallel", "arbitrary"),
            vmem_limit_bytes=int(vmem_limit)),
        cost_estimate=pl.CostEstimate(
            flops=flops, transcendentals=0, bytes_accessed=int(bytes_accessed)),
    )(x2, w1, b1r, w2, b2r)

    if n_pad != n:
        out = out[:n]
    return out.reshape(batch, seq, d_model)


if __name__ == "__main__":
    # Small shapes consistent with the module: (batch, seq, d_model), d_ff.
    # Chosen so the grid has 2 row tiles and 2 d_ff chunks (exercises the
    # serpentine + accumulation paths).
    batch, seq, d_model, d_ff = 2, 16, 32, 256

    key = jax.random.PRNGKey(0)
    kx, k1, k2, k3, k4 = jax.random.split(key, 5)

    x = jax.random.normal(kx, (batch, seq, d_model), dtype=jnp.float32)

    # Deterministic parameter init (PyTorch-Linear-like uniform bounds).
    bound1 = 1.0 / (d_model ** 0.5)
    bound2 = 1.0 / (d_ff ** 0.5)
    w1 = jax.random.uniform(k1, (d_ff, d_model), jnp.float32, -bound1, bound1)
    b1 = jax.random.uniform(k2, (d_ff,), jnp.float32, -bound1, bound1)
    w2 = jax.random.uniform(k3, (d_model, d_ff), jnp.float32, -bound2, bound2)
    b2 = jax.random.uniform(k4, (d_model,), jnp.float32, -bound2, bound2)

    # --- f32 path (direct o_ref accumulation; eval-mode dropout == identity) ---
    y = positionwise_ffn(x, w1, b1, w2, b2, tf=128)
    jax.block_until_ready(y)
    h_ref = jnp.maximum(x @ w1.T + b1, 0.0)
    y_ref = h_ref @ w2.T + b2
    assert y.shape == (batch, seq, d_model)
    # Tolerance accounts for TPU f32 matmul pass-count differences between the
    # Mosaic MXU lowering and the XLA reference; real structural bugs are >>2e-2.
    assert jnp.allclose(y, y_ref, atol=2e-2, rtol=2e-2)

    # --- bf16 path (f32 VMEM scratch accumulator + final downcast) ---
    xb, w1b, b1b, w2b, b2b = (v.astype(jnp.bfloat16) for v in (x, w1, b1, w2, b2))
    yb = positionwise_ffn(xb, w1b, b1b, w2b, b2b, tf=128)
    jax.block_until_ready(yb)
    hb = jnp.maximum(xb.astype(jnp.float32) @ w1b.T.astype(jnp.float32)
                     + b1b.astype(jnp.float32), 0.0).astype(jnp.bfloat16)
    yb_ref = (hb.astype(jnp.float32) @ w2b.T.astype(jnp.float32)
              + b2b.astype(jnp.float32)).astype(jnp.bfloat16)
    assert yb.shape == (batch, seq, d_model) and yb.dtype == jnp.bfloat16
    assert jnp.allclose(yb.astype(jnp.float32), yb_ref.astype(jnp.float32),
                        atol=6e-2, rtol=6e-2)

    print("KERNEL_OK")
</pallas_src>

<mosaic_0001>
module attributes {stable_mosaic.version = 11 : i64} {
  func.func @ffn_kernel_f32out(%arg0: i32, %arg1: i32, %arg2: memref<16x32xf32, #tpu.memory_space<vmem>>, %arg3: memref<128x32xf32, #tpu.memory_space<vmem>>, %arg4: memref<1x128xf32, #tpu.memory_space<vmem>>, %arg5: memref<32x128xf32, #tpu.memory_space<vmem>>, %arg6: memref<1x32xf32, #tpu.memory_space<vmem>>, %arg7: memref<16x32xf32, #tpu.memory_space<vmem>>) attributes {dimension_semantics = [#tpu.dimension_semantics<parallel>, #tpu.dimension_semantics<arbitrary>], iteration_bounds = array<i64: 2, 2>, scalar_prefetch = 0 : i64, scratch_operands = 0 : i64, tpu.core_type = #tpu.core_type<tc>, window_params = [{transform_indices = @transform_0, window_bounds = array<i64: 16, 32>}, {transform_indices = @transform_1, window_bounds = array<i64: 128, 32>}, {transform_indices = @transform_2, window_bounds = array<i64: 1, 128>}, {transform_indices = @transform_3, window_bounds = array<i64: 32, 128>}, {pipeline_mode = #tpu.pipeline_mode<synchronous>, transform_indices = @transform_4, window_bounds = array<i64: 1, 32>}, {transform_indices = @transform_5, window_bounds = array<i64: 16, 32>}]} {
    %c0_i32 = arith.constant 0 : i32
    %0 = arith.cmpi eq, %arg1, %c0_i32 : i32
    %1 = arith.extui %0 : i1 to i32
    %c0_i32_0 = arith.constant 0 : i32
    %2 = arith.cmpi ne, %1, %c0_i32_0 : i32
    scf.if %2 {
      %cst_15 = arith.constant 0.000000e+00 : f32
      %19 = vector.broadcast %cst_15 : f32 to vector<16x32xf32>
      %c0_16 = arith.constant 0 : index
      %c0_17 = arith.constant 0 : index
      %20 = vector.load %arg7[%c0_16, %c0_17] : memref<16x32xf32, #tpu.memory_space<vmem>>, vector<16x32xf32>
      tpu.vector_store %arg7[%c0_16, %c0_17], %19 {strides = array<i32>} : memref<16x32xf32, #tpu.memory_space<vmem>>, vector<16x32xf32>,
    } else {
    }
    %c0 = arith.constant 0 : index
    %c0_1 = arith.constant 0 : index
    %3 = vector.load %arg7[%c0, %c0_1] : memref<16x32xf32, #tpu.memory_space<vmem>>, vector<16x32xf32>
    %c0_2 = arith.constant 0 : index
    %c0_3 = arith.constant 0 : index
    %4 = vector.load %arg2[%c0_2, %c0_3] : memref<16x32xf32, #tpu.memory_space<vmem>>, vector<16x32xf32>
    %c0_4 = arith.constant 0 : index
    %c0_5 = arith.constant 0 : index
    %5 = vector.load %arg3[%c0_4, %c0_5] : memref<128x32xf32, #tpu.memory_space<vmem>>, vector<128x32xf32>
    %cst = arith.constant dense<0.000000e+00> : vector<16x128xf32>
    %6 = tpu.matmul %4, %5, %cst {dimension_numbers = #tpu.dot_dimension_numbers<[1], [1], [0], [0], [0, 0, 1, 0], [], []>} : vector<16x32xf32>, vector<128x32xf32>, vector<16x128xf32> -> vector<16x128xf32>
    %c0_6 = arith.constant 0 : index
    %c0_7 = arith.constant 0 : index
    %7 = vector.load %arg4[%c0_6, %c0_7] : memref<1x128xf32, #tpu.memory_space<vmem>>, vector<1x128xf32>
    %8 = vector.broadcast %7 : vector<1x128xf32> to vector<16x128xf32>
    %9 = arith.addf %6, %8 : vector<16x128xf32>
    %cst_8 = arith.constant 0.000000e+00 : f32
    %10 = vector.broadcast %cst_8 : f32 to vector<16x128xf32>
    %11 = arith.maximumf %9, %10 : vector<16x128xf32>
    %c0_9 = arith.constant 0 : index
    %c0_10 = arith.constant 0 : index
    %12 = vector.load %arg5[%c0_9, %c0_10] : memref<32x128xf32, #tpu.memory_space<vmem>>, vector<32x128xf32>
    %cst_11 = arith.constant dense<0.000000e+00> : vector<16x32xf32>
    %13 = tpu.matmul %11, %12, %cst_11 {dimension_numbers = #tpu.dot_dimension_numbers<[1], [1], [0], [0], [0, 0, 1, 0], [], []>} : vector<16x128xf32>, vector<32x128xf32>, vector<16x32xf32> -> vector<16x32xf32>
    %14 = arith.addf %3, %13 : vector<16x32xf32>
    %c0_12 = arith.constant 0 : index
    %c0_13 = arith.constant 0 : index
    %15 = vector.load %arg7[%c0_12, %c0_13] : memref<16x32xf32, #tpu.memory_space<vmem>>, vector<16x32xf32>
    tpu.vector_store %arg7[%c0_12, %c0_13], %14 {strides = array<i32>} : memref<16x32xf32, #tpu.memory_space<vmem>>, vector<16x32xf32>,
    %c1_i32 = arith.constant 1 : i32
    %16 = arith.cmpi eq, %arg1, %c1_i32 : i32
    %17 = arith.extui %16 : i1 to i32
    %c0_i32_14 = arith.constant 0 : i32
    %18 = arith.cmpi ne, %17, %c0_i32_14 : i32
    scf.if %18 {
      %c0_15 = arith.constant 0 : index
      %c0_16 = arith.constant 0 : index
      %19 = vector.load %arg7[%c0_15, %c0_16] : memref<16x32xf32, #tpu.memory_space<vmem>>, vector<16x32xf32>
      %c0_17 = arith.constant 0 : index
      %c0_18 = arith.constant 0 : index
      %20 = vector.load %arg6[%c0_17, %c0_18] : memref<1x32xf32, #tpu.memory_space<vmem>>, vector<1x32xf32>
      %21 = vector.broadcast %20 : vector<1x32xf32> to vector<16x32xf32>
      %22 = arith.addf %19, %21 : vector<16x32xf32>
      %c0_19 = arith.constant 0 : index
      %c0_20 = arith.constant 0 : index
      %23 = vector.load %arg7[%c0_19, %c0_20] : memref<16x32xf32, #tpu.memory_space<vmem>>, vector<16x32xf32>
      tpu.vector_store %arg7[%c0_19, %c0_20], %22 {strides = array<i32>} : memref<16x32xf32, #tpu.memory_space<vmem>>, vector<16x32xf32>,
    } else {
    }
    return
  }
  func.func @transform_0(%arg0: i32, %arg1: i32) -> (i32, i32) {
    %c0_i32 = arith.constant 0 : i32
    %c0_i32_0 = arith.constant 0 : i32
    return %arg0, %c0_i32 : i32, i32
  }
  func.func @transform_1(%arg0: i32, %arg1: i32) -> (i32, i32) {
    %c2_i32 = arith.constant 2 : i32
    %c0_i32 = arith.constant 0 : i32
    %0 = arith.cmpi eq, %c2_i32, %c0_i32 : i32
    %c1_i32 = arith.constant 1 : i32
    %1 = arith.select %0, %c1_i32, %c2_i32 : i32
    %2 = arith.remsi %arg0, %1 : i32
    %c0_i32_0 = arith.constant 0 : i32
    %3 = arith.cmpi ne, %2, %c0_i32_0 : i32
    %c0_i32_1 = arith.constant 0 : i32
    %4 = arith.cmpi slt, %2, %c0_i32_1 : i32
    %c0_i32_2 = arith.constant 0 : i32
    %5 = arith.cmpi slt, %1, %c0_i32_2 : i32
    %6 = arith.xori %4, %5 : i1
    %7 = arith.andi %6, %3 : i1
    %8 = arith.addi %2, %1 : i32
    %9 = arith.select %7, %8, %2 : i32
    %c0_i32_3 = arith.constant 0 : i32
    %10 = arith.cmpi eq, %9, %c0_i32_3 : i32
    %c1_i32_4 = arith.constant 1 : i32
    %11 = arith.subi %c1_i32_4, %arg1 : i32
    %12 = arith.select %10, %arg1, %11 : i32
    %c0_i32_5 = arith.constant 0 : i32
    %c0_i32_6 = arith.constant 0 : i32
    return %12, %c0_i32_5 : i32, i32
  }
  func.func @transform_2(%arg0: i32, %arg1: i32) -> (i32, i32) {
    %c2_i32 = arith.constant 2 : i32
    %c0_i32 = arith.constant 0 : i32
    %0 = arith.cmpi eq, %c2_i32, %c0_i32 : i32
    %c1_i32 = arith.constant 1 : i32
    %1 = arith.select %0, %c1_i32, %c2_i32 : i32
    %2 = arith.remsi %arg0, %1 : i32
    %c0_i32_0 = arith.constant 0 : i32
    %3 = arith.cmpi ne, %2, %c0_i32_0 : i32
    %c0_i32_1 = arith.constant 0 : i32
    %4 = arith.cmpi slt, %2, %c0_i32_1 : i32
    %c0_i32_2 = arith.constant 0 : i32
    %5 = arith.cmpi slt, %1, %c0_i32_2 : i32
    %6 = arith.xori %4, %5 : i1
    %7 = arith.andi %6, %3 : i1
    %8 = arith.addi %2, %1 : i32
    %9 = arith.select %7, %8, %2 : i32
    %c0_i32_3 = arith.constant 0 : i32
    %10 = arith.cmpi eq, %9, %c0_i32_3 : i32
    %c1_i32_4 = arith.constant 1 : i32
    %11 = arith.subi %c1_i32_4, %arg1 : i32
    %12 = arith.select %10, %arg1, %11 : i32
    %c0_i32_5 = arith.constant 0 : i32
    %c0_i32_6 = arith.constant 0 : i32
    return %c0_i32_5, %12 : i32, i32
  }
  func.func @transform_3(%arg0: i32, %arg1: i32) -> (i32, i32) {
    %c2_i32 = arith.constant 2 : i32
    %c0_i32 = arith.constant 0 : i32
    %0 = arith.cmpi eq, %c2_i32, %c0_i32 : i32
    %c1_i32 = arith.constant 1 : i32
    %1 = arith.select %0, %c1_i32, %c2_i32 : i32
    %2 = arith.remsi %arg0, %1 : i32
    %c0_i32_0 = arith.constant 0 : i32
    %3 = arith.cmpi ne, %2, %c0_i32_0 : i32
    %c0_i32_1 = arith.constant 0 : i32
    %4 = arith.cmpi slt, %2, %c0_i32_1 : i32
    %c0_i32_2 = arith.constant 0 : i32
    %5 = arith.cmpi slt, %1, %c0_i32_2 : i32
    %6 = arith.xori %4, %5 : i1
    %7 = arith.andi %6, %3 : i1
    %8 = arith.addi %2, %1 : i32
    %9 = arith.select %7, %8, %2 : i32
    %c0_i32_3 = arith.constant 0 : i32
    %10 = arith.cmpi eq, %9, %c0_i32_3 : i32
    %c1_i32_4 = arith.constant 1 : i32
    %11 = arith.subi %c1_i32_4, %arg1 : i32
    %12 = arith.select %10, %arg1, %11 : i32
    %c0_i32_5 = arith.constant 0 : i32
    %c0_i32_6 = arith.constant 0 : i32
    return %c0_i32_5, %12 : i32, i32
  }
  func.func @transform_4(%arg0: i32, %arg1: i32) -> (i32, i32) {
    %c0_i32 = arith.constant 0 : i32
    %c0_i32_0 = arith.constant 0 : i32
    %c0_i32_1 = arith.constant 0 : i32
    return %c0_i32, %c0_i32_0 : i32, i32
  }
  func.func @transform_5(%arg0: i32, %arg1: i32) -> (i32, i32) {
    %c0_i32 = arith.constant 0 : i32
    %c0_i32_0 = arith.constant 0 : i32
    return %arg0, %c0_i32 : i32, i32
  }
}

</mosaic_0001>

<llo_original>
// kernel: tpu_custom_call.1
$region0: #{tpu_custom_call.1}
  #allocation0 [shape = 'u32[]', space=smem, size = 0x4, offset = 0x4, fixed_abs, tag = 'smem constant byte address 0x4 - core index']
  #allocation1 [shape = 'u32[144,128]{1,0:T(1,128)}', space=vmem, size = 0x12000, scoped, tag = 'internal scratch']
  %s0 = inlined_call_operand.vmem [shape: f32[32,32], index: 0, kind: input, shape index: {}]
  %s1 = inlined_call_operand.vmem [shape: f32[256,32], index: 1, kind: input, shape index: {}]
  %s2 = inlined_call_operand.vmem [shape: f32[1,256], index: 2, kind: input, shape index: {}]
  %s3 = inlined_call_operand.vmem [shape: f32[32,256], index: 3, kind: input, shape index: {}]
  %s4 = inlined_call_operand.vmem [shape: f32[1,32], index: 4, kind: input, shape index: {}]
  %s5 = inlined_call_operand.hbm [shape: f32[32,32], index: 5, kind: output, shape index: {}]
  %s6 = sld [smem:[#allocation0]]
  $region99: #{tpu_custom_call.1} parent=0
    _
  %s8 = ssub.s32 1, %s6
  %s9 = scalar_select 0, %s8, %s6
  $region1: #{tpu_custom_call.1} parent=0
    #allocation2 [shape = 'u8[32768]{0}', space=vmem, size = 0x8000, scoped, tag = 'input window, operand 3']
    #allocation3 [shape = 'u8[16384]{0}', space=vmem, size = 0x4000, scoped, tag = 'output window, operand 0']
    #allocation4 [shape = 's32[2]{0}', space=sflag, size = 0x8, scoped, tag = 'scoped memory for tpu_custom_call.1']
    %10 = vsyncpa [#allocation4], 0
    %s11 = scalar_lea.sflag [#allocation4], 1
    %12 = vsyncpa %s11, 0
    loop: start=0, step=1, limit=6
    $region2: #{tpu_custom_call.1} parent=1 // loop_pre_header
      _
    $region3: #{tpu_custom_call.1} parent=1 // loop_header
      %s14 = sphi 0, %s18
      %p15 = scmp.ge.s32.totalorder %s14, 6
      %s21 = sphi 0, %s33
      %s22 = sphi 0, %s29
      %s23 = sphi 0, %s21
      %s24 = sphi 0, %s22
      %s25 = sphi 0, %s23
      %s26 = sphi 0, %s24
      %s36 = sphi 0, %s38
      %s39 = sphi 0, %s36
      %s40 = sphi 0, %s39
      %s56 = sphi 0, %s40
      %s92 = sphi 0, %s94
      %s95 = sphi 0, %s92
      %s96 = sphi 0, %s95
      %s112 = sphi 0, %s96
      %s148 = sphi 0, %s150
      %s151 = sphi 0, %s148
      %s152 = sphi 0, %s151
      %s168 = sphi 0, %s152
      %s204 = sphi 0, %s206
      %s207 = sphi 0, %s204
      %s208 = sphi 0, %s207
      %s224 = sphi 0, %s208
      %s228 = sphi 0, %s228
      %s230 = sphi 0, %s228
      %s231 = sphi 0, %s230
      %s245 = sphi 0, %s231
      %s251 = sphi 0, %s253
      %s254 = sphi 0, %s251
      %s255 = sphi 0, %s254
      %s271 = sphi 0, %s255
    $region4: #{tpu_custom_call.1} parent=1 // loop_header_branch
      %17 = sbr.rel (%p15) target = $region8
    $region5: #{tpu_custom_call.1} parent=1 // loop_body
      %s19 = ssub.s32 %s14, 1
      %s20 = ssub.s32 %s14, 2
      %s27 = sadd.s32 1, %s22
      %p28 = scmp.ge.s32.totalorder %s27, 2
      %s29 = scalar_select %p28, 0, %s27
      %s30 = sadd.s32 1, %s21
      %s31 = scalar_select %p28, %s30, %s21
      %p32 = scmp.ge.s32.totalorder %s31, 2
      %s33 = scalar_select %p32, 0, %s31
      %s34 = ssub.s32 %s21, %s33
      %p35 = scmp.eq.s32.totalorder %s34, 0
      %s37 = sadd.s32 %s36, 1
      %s38 = scalar_select %p35, %s36, %s37
      %p41 = pneg %p35
      %p42 = scmp.eq.s32.totalorder %s14, 3
      %p43 = por %p41, %p42
      %p44 = scmp.ne.s32.totalorder %s36, %s39
      %p45 = scmp.eq.s32.totalorder %s14, 0
      %p46 = por %p44, %p45
      %p47 = scmp.ne.s32.totalorder %s36, %s39
      %p48 = scmp.eq.s32.totalorder %s19, 3
      %p49 = por %p47, %p48
      %p50 = scmp.ne.s32.totalorder %s39, %s40
      %p51 = scmp.eq.s32.totalorder %s19, 0
      %p52 = por %p50, %p51
      %p53 = scmp.ne.s32.totalorder %s39, %s40
      %p54 = scmp.eq.s32.totalorder %s20, 3
      %p55 = por %p53, %p54
      %p57 = scmp.ne.s32.totalorder %s40, %s56
      %p58 = scmp.eq.s32.totalorder %s20, 0
      %p59 = por %p57, %p58
      %p60 = scmp.lt.s32.totalorder %s21, 0
      %s61 = ssub.s32 0, %s21
      %s62 = scalar_select %p60, %s61, %s21
      %s63 = sand.u32 %s62, 1
      %s64 = ssub.s32 0, %s63
      %s65 = scalar_select %p60, %s64, %s63
      %p66 = scmp.ne.s32.totalorder %s65, 0
      %p67 = scmp.lt.s32.totalorder %s65, 0
      %p68 = pnand %p67, %p66
      %p69 = pneg %p68
      %s70 = sadd.s32 %s65, 2
      %s71 = scalar_select %p69, %s70, %s65
      %p72 = scmp.eq.s32.totalorder %s71, 0
      %s73 = ssub.s32 1, %s22
      %s74 = scalar_select %p72, %s22, %s73
      %p75 = scmp.lt.s32.totalorder %s33, 0
      %s76 = ssub.s32 0, %s33
      %s77 = scalar_select %p75, %s76, %s33
      %s78 = sand.u32 %s77, 1
      %s79 = ssub.s32 0, %s78
      %s80 = scalar_select %p75, %s79, %s78
      %p81 = scmp.ne.s32.totalorder %s80, 0
      %p82 = scmp.lt.s32.totalorder %s80, 0
      %p83 = pnand %p82, %p81
      %p84 = pneg %p83
      %s85 = sadd.s32 %s80, 2
      %s86 = scalar_select %p84, %s85, %s80
      %p87 = scmp.eq.s32.totalorder %s86, 0
      %s88 = ssub.s32 1, %s29
      %s89 = scalar_select %p87, %s29, %s88
      %s90 = ssub.s32 %s74, %s89
      %p91 = scmp.eq.s32.totalorder %s90, 0
      %s93 = sadd.s32 %s92, 1
      %s94 = scalar_select %p91, %s92, %s93
      %p97 = pneg %p91
      %p98 = scmp.eq.s32.totalorder %s14, 3
      %p99 = por %p97, %p98
      %p100 = scmp.ne.s32.totalorder %s92, %s95
      %p101 = scmp.eq.s32.totalorder %s14, 0
      %p102 = por %p100, %p101
      %p103 = scmp.ne.s32.totalorder %s92, %s95
      %p104 = scmp.eq.s32.totalorder %s19, 3
      %p105 = por %p103, %p104
      %p106 = scmp.ne.s32.totalorder %s95, %s96
      %p107 = scmp.eq.s32.totalorder %s19, 0
      %p108 = por %p106, %p107
      %p109 = scmp.ne.s32.totalorder %s95, %s96
      %p110 = scmp.eq.s32.totalorder %s20, 3
      %p111 = por %p109, %p110
      %p113 = scmp.ne.s32.totalorder %s96, %s112
      %p114 = scmp.eq.s32.totalorder %s20, 0
      %p115 = por %p113, %p114
      %p116 = scmp.lt.s32.totalorder %s21, 0
      %s117 = ssub.s32 0, %s21
      %s118 = scalar_select %p116, %s117, %s21
      %s119 = sand.u32 %s118, 1
      %s120 = ssub.s32 0, %s119
      %s121 = scalar_select %p116, %s120, %s119
      %p122 = scmp.ne.s32.totalorder %s121, 0
      %p123 = scmp.lt.s32.totalorder %s121, 0
      %p124 = pnand %p123, %p122
      %p125 = pneg %p124
      %s126 = sadd.s32 %s121, 2
      %s127 = scalar_select %p125, %s126, %s121
      %p128 = scmp.eq.s32.totalorder %s127, 0
      %s129 = ssub.s32 1, %s22
      %s130 = scalar_select %p128, %s22, %s129
      %p131 = scmp.lt.s32.totalorder %s33, 0
      %s132 = ssub.s32 0, %s33
      %s133 = scalar_select %p131, %s132, %s33
      %s134 = sand.u32 %s133, 1
      %s135 = ssub.s32 0, %s134
      %s136 = scalar_select %p131, %s135, %s134
      %p137 = scmp.ne.s32.totalorder %s136, 0
      %p138 = scmp.lt.s32.totalorder %s136, 0
      %p139 = pnand %p138, %p137
      %p140 = pneg %p139
      %s141 = sadd.s32 %s136, 2
      %s142 = scalar_select %p140, %s141, %s136
      %p143 = scmp.eq.s32.totalorder %s142, 0
      %s144 = ssub.s32 1, %s29
      %s145 = scalar_select %p143, %s29, %s144
      %s146 = ssub.s32 %s130, %s145
      %p147 = scmp.eq.s32.totalorder %s146, 0
      %s149 = sadd.s32 %s148, 1
      %s150 = scalar_select %p147, %s148, %s149
      %p153 = pneg %p147
      %p154 = scmp.eq.s32.totalorder %s14, 3
      %p155 = por %p153, %p154
      %p156 = scmp.ne.s32.totalorder %s148, %s151
      %p157 = scmp.eq.s32.totalorder %s14, 0
      %p158 = por %p156, %p157
      %p159 = scmp.ne.s32.totalorder %s148, %s151
      %p160 = scmp.eq.s32.totalorder %s19, 3
      %p161 = por %p159, %p160
      %p162 = scmp.ne.s32.totalorder %s151, %s152
      %p163 = scmp.eq.s32.totalorder %s19, 0
      %p164 = por %p162, %p163
      %p165 = scmp.ne.s32.totalorder %s151, %s152
      %p166 = scmp.eq.s32.totalorder %s20, 3
      %p167 = por %p165, %p166
      %p169 = scmp.ne.s32.totalorder %s152, %s168
      %p170 = scmp.eq.s32.totalorder %s20, 0
      %p171 = por %p169, %p170
      %p172 = scmp.lt.s32.totalorder %s21, 0
      %s173 = ssub.s32 0, %s21
      %s174 = scalar_select %p172, %s173, %s21
      %s175 = sand.u32 %s174, 1
      %s176 = ssub.s32 0, %s175
      %s177 = scalar_select %p172, %s176, %s175
      %p178 = scmp.ne.s32.totalorder %s177, 0
      %p179 = scmp.lt.s32.totalorder %s177, 0
      %p180 = pnand %p179, %p178
      %p181 = pneg %p180
      %s182 = sadd.s32 %s177, 2
      %s183 = scalar_select %p181, %s182, %s177
      %p184 = scmp.eq.s32.totalorder %s183, 0
      %s185 = ssub.s32 1, %s22
      %s186 = scalar_select %p184, %s22, %s185
      %p187 = scmp.lt.s32.totalorder %s33, 0
      %s188 = ssub.s32 0, %s33
      %s189 = scalar_select %p187, %s188, %s33
      %s190 = sand.u32 %s189, 1
      %s191 = ssub.s32 0, %s190
      %s192 = scalar_select %p187, %s191, %s190
      %p193 = scmp.ne.s32.totalorder %s192, 0
      %p194 = scmp.lt.s32.totalorder %s192, 0
      %p195 = pnand %p194, %p193
      %p196 = pneg %p195
      %s197 = sadd.s32 %s192, 2
      %s198 = scalar_select %p196, %s197, %s192
      %p199 = scmp.eq.s32.totalorder %s198, 0
      %s200 = ssub.s32 1, %s29
      %s201 = scalar_select %p199, %s29, %s200
      %s202 = ssub.s32 %s186, %s201
      %p203 = scmp.eq.s32.totalorder %s202, 0
      %s205 = sadd.s32 %s204, 1
      %s206 = scalar_select %p203, %s204, %s205
      %p209 = pneg %p203
      %p210 = scmp.eq.s32.totalorder %s14, 3
      %p211 = por %p209, %p210
      %p212 = scmp.ne.s32.totalorder %s204, %s207
      %p213 = scmp.eq.s32.totalorder %s14, 0
      %p214 = por %p212, %p213
      %p215 = scmp.ne.s32.totalorder %s204, %s207
      %p216 = scmp.eq.s32.totalorder %s19, 3
      %p217 = por %p215, %p216
      %p218 = scmp.ne.s32.totalorder %s207, %s208
      %p219 = scmp.eq.s32.totalorder %s19, 0
      %p220 = por %p218, %p219
      %p221 = scmp.ne.s32.totalorder %s207, %s208
      %p222 = scmp.eq.s32.totalorder %s20, 3
      %p223 = por %p221, %p222
      %p225 = scmp.ne.s32.totalorder %s208, %s224
      %p226 = scmp.eq.s32.totalorder %s20, 0
      %p227 = por %p225, %p226
      %s229 = sadd.s32 %s228, 1
      %p232 = scmp.eq.s32.totalorder %s14, 3
      %p233 = scmp.ne.s32.totalorder %s228, %s230
      %p234 = scmp.eq.s32.totalorder %s14, 0
      %p235 = por %p233, %p234
      %p236 = scmp.ne.s32.totalorder %s228, %s230
      %p237 = scmp.eq.s32.totalorder %s19, 3
      %p238 = por %p236, %p237
      %p239 = scmp.ne.s32.totalorder %s230, %s231
      %p240 = scmp.eq.s32.totalorder %s19, 0
      %p241 = por %p239, %p240
      %p242 = scmp.ne.s32.totalorder %s230, %s231
      %p243 = scmp.eq.s32.totalorder %s20, 3
      %p244 = por %p242, %p243
      %p246 = scmp.ne.s32.totalorder %s231, %s245
      %p247 = scmp.eq.s32.totalorder %s20, 0
      %p248 = por %p246, %p247
      %s249 = ssub.s32 %s21, %s33
      %p250 = scmp.eq.s32.totalorder %s249, 0
      %s252 = sadd.s32 %s251, 1
      %s253 = scalar_select %p250, %s251, %s252
      %p256 = pneg %p250
      %p257 = scmp.eq.s32.totalorder %s14, 3
      %p258 = por %p256, %p257
      %p259 = scmp.ne.s32.totalorder %s251, %s254
      %p260 = scmp.eq.s32.totalorder %s14, 0
      %p261 = por %p259, %p260
      %p262 = scmp.ne.s32.totalorder %s251, %s254
      %p263 = scmp.eq.s32.totalorder %s19, 3
      %p264 = por %p262, %p263
      %p265 = scmp.ne.s32.totalorder %s254, %s255
      %p266 = scmp.eq.s32.totalorder %s19, 0
      %p267 = por %p265, %p266
      %p268 = scmp.ne.s32.totalorder %s254, %s255
      %p269 = scmp.eq.s32.totalorder %s20, 3
      %p270 = por %p268, %p269
      %p272 = scmp.ne.s32.totalorder %s255, %s271
      %p273 = scmp.eq.s32.totalorder %s20, 0
      %p274 = por %p272, %p273
      %p275 = scmp.le.s32.totalorder 1, %s14
      %p276 = scmp.lt.s32.totalorder %s14, 5
      %p277 = pnand %p275, %p276
      %p278 = pneg %p277
      // Predicated region
      $region9: #{tpu_custom_call.1} parent=5 // pred_check
        _
      $region10: #{tpu_custom_call.1} parent=5 // pred_check_branch
        %280 = sbr.rel (%p277) target = $region12
      $region11: #{tpu_custom_call.1} parent=5 // pred_region
        %s281 = ssub.s32 %s14, 1
        // Predicated region
        $region13: #{tpu_custom_call.1} parent=11 // pred_check
          %p282 = pneg %p241
        $region14: #{tpu_custom_call.1} parent=11 // pred_check_branch
          %284 = sbr.rel (%p282) target = $region16
        $region15: #{tpu_custom_call.1} parent=11 // pred_region
          _
        $region16: #{tpu_custom_call.1} parent=11 // pred_fallthru
          _
      $region12: #{tpu_custom_call.1} parent=5 // pred_fallthru
        _
      %p285 = scmp.lt.s32.totalorder %s14, 4
      // Predicated region
      $region17: #{tpu_custom_call.1} parent=5 // pred_check
        %p286 = pneg %p285
      $region18: #{tpu_custom_call.1} parent=5 // pred_check_branch
        %288 = sbr.rel (%p286) target = $region20
      $region19: #{tpu_custom_call.1} parent=5 // pred_region
        // Predicated region
        $region21: #{tpu_custom_call.1} parent=19 // pred_check
          %p289 = pneg %p46
        $region22: #{tpu_custom_call.1} parent=19 // pred_check_branch
          %291 = sbr.rel (%p289) target = $region24
        $region23: #{tpu_custom_call.1} parent=19 // pred_region
          %s292 = smul.u32 2, %s21
          %p293 = scmp.lt.s32.totalorder %s292, 3
          %s294 = scalar_select %p293, %s292, 3
          %s295 = smul.addr %s294, 8
          %s296 = scalar_lea.vmem %s0, %s295
          %s297 = smul.u32 2, %s21
        $region24: #{tpu_custom_call.1} parent=19 // pred_fallthru
          _
        // Predicated region
        $region25: #{tpu_custom_call.1} parent=19 // pred_check
          %p298 = pneg %p102
        $region26: #{tpu_custom_call.1} parent=19 // pred_check_branch
          %300 = sbr.rel (%p298) target = $region28
        $region27: #{tpu_custom_call.1} parent=19 // pred_region
          %p301 = scmp.lt.s32.totalorder %s21, 0
          %s302 = ssub.s32 0, %s21
          %s303 = scalar_select %p301, %s302, %s21
          %s304 = sand.u32 %s303, 1
          %s305 = ssub.s32 0, %s304
          %s306 = scalar_select %p301, %s305, %s304
          %p307 = scmp.ne.s32.totalorder %s306, 0
          %p308 = scmp.lt.s32.totalorder %s306, 0
          %p309 = pnand %p308, %p307
          %p310 = pneg %p309
          %s311 = sadd.s32 %s306, 2
          %s312 = scalar_select %p310, %s311, %s306
          %p313 = scmp.eq.s32.totalorder %s312, 0
          %s314 = ssub.s32 1, %s22
          %s315 = scalar_select %p313, %s22, %s314
          %s316 = smul.u32 16, %s315
          %p317 = scmp.lt.s32.totalorder %s316, 31
          %s318 = scalar_select %p317, %s316, 31
          %s319 = smul.addr %s318, 8
          %s320 = scalar_lea.vmem %s1, %s319
          %p321 = scmp.lt.s32.totalorder %s21, 0
          %s322 = ssub.s32 0, %s21
          %s323 = scalar_select %p321, %s322, %s21
          %s324 = sand.u32 %s323, 1
          %s325 = ssub.s32 0, %s324
          %s326 = scalar_select %p321, %s325, %s324
          %p327 = scmp.ne.s32.totalorder %s326, 0
          %p328 = scmp.lt.s32.totalorder %s326, 0
          %p329 = pnand %p328, %p327
          %p330 = pneg %p329
          %s331 = sadd.s32 %s326, 2
          %s332 = scalar_select %p330, %s331, %s326
          %p333 = scmp.eq.s32.totalorder %s332, 0
          %s334 = ssub.s32 1, %s22
          %s335 = scalar_select %p333, %s22, %s334
          %s336 = smul.u32 16, %s335
        $region28: #{tpu_custom_call.1} parent=19 // pred_fallthru
          _
        // Predicated region
        $region29: #{tpu_custom_call.1} parent=19 // pred_check
          %p337 = pneg %p158
        $region30: #{tpu_custom_call.1} parent=19 // pred_check_branch
          %339 = sbr.rel (%p337) target = $region32
        $region31: #{tpu_custom_call.1} parent=19 // pred_region
          %p340 = scmp.lt.s32.totalorder %s21, 0
          %s341 = ssub.s32 0, %s21
          %s342 = scalar_select %p340, %s341, %s21
          %s343 = sand.u32 %s342, 1
          %s344 = ssub.s32 0, %s343
          %s345 = scalar_select %p340, %s344, %s343
          %p346 = scmp.ne.s32.totalorder %s345, 0
          %p347 = scmp.lt.s32.totalorder %s345, 0
          %p348 = pnand %p347, %p346
          %p349 = pneg %p348
          %s350 = sadd.s32 %s345, 2
          %s351 = scalar_select %p349, %s350, %s345
          %p352 = scmp.eq.s32.totalorder %s351, 0
          %s353 = ssub.s32 1, %s22
          %s354 = scalar_select %p352, %s22, %s353
          %p355 = scmp.lt.s32.totalorder %s354, 1
          %s356 = scalar_select %p355, %s354, 1
          %s357 = scalar_lea.vmem %s2, %s356
          %p358 = scmp.lt.s32.totalorder %s21, 0
          %s359 = ssub.s32 0, %s21
          %s360 = scalar_select %p358, %s359, %s21
          %s361 = sand.u32 %s360, 1
          %s362 = ssub.s32 0, %s361
          %s363 = scalar_select %p358, %s362, %s361
          %p364 = scmp.ne.s32.totalorder %s363, 0
          %p365 = scmp.lt.s32.totalorder %s363, 0
          %p366 = pnand %p365, %p364
          %p367 = pneg %p366
          %s368 = sadd.s32 %s363, 2
          %s369 = scalar_select %p367, %s368, %s363
          %p370 = scmp.eq.s32.totalorder %s369, 0
          %s371 = ssub.s32 1, %s22
          %s372 = scalar_select %p370, %s22, %s371
        $region32: #{tpu_custom_call.1} parent=19 // pred_fallthru
          _
        // Predicated region
        $region33: #{tpu_custom_call.1} parent=19 // pred_check
          %p373 = pneg %p214
        $region34: #{tpu_custom_call.1} parent=19 // pred_check_branch
          %375 = sbr.rel (%p373) target = $region36
        $region35: #{tpu_custom_call.1} parent=19 // pred_region
          %s376 = sand.u32 %s204, 1
          %s377 = sand.u32 %s204, 1
          %s378 = smul.addr %s377, 32
          %s379 = scalar_lea.vmem [#allocation2], %s378
          %p380 = scmp.lt.s32.totalorder %s21, 0
          %s381 = ssub.s32 0, %s21
          %s382 = scalar_select %p380, %s381, %s21
          %s383 = sand.u32 %s382, 1
          %s384 = ssub.s32 0, %s383
          %s385 = scalar_select %p380, %s384, %s383
          %p386 = scmp.ne.s32.totalorder %s385, 0
          %p387 = scmp.lt.s32.totalorder %s385, 0
          %p388 = pnand %p387, %p386
          %p389 = pneg %p388
          %s390 = sadd.s32 %s385, 2
          %s391 = scalar_select %p389, %s390, %s385
          %p392 = scmp.eq.s32.totalorder %s391, 0
          %s393 = ssub.s32 1, %s22
          %s394 = scalar_select %p392, %s22, %s393
          %s395 = smul.addr %s394, 8
          %s396 = scalar_lea.vmem %s3, %s395
          // Predicated region
          $region37: #{tpu_custom_call.1} parent=35 // pred_check
            _
          $region38: #{tpu_custom_call.1} parent=35 // pred_check_branch
            %398 = sbr.rel (0) target = $region40
          $region39: #{tpu_custom_call.1} parent=35 // pred_region
            // Predicated region
            $region41: #{tpu_custom_call.1} parent=39 // pred_check
              _
            $region42: #{tpu_custom_call.1} parent=39 // pred_check_branch
              %400 = sbr.rel (0) target = $region44
            $region43: #{tpu_custom_call.1} parent=39 // pred_region
              // Predicated region
              $region56: #{tpu_custom_call.1} parent=43 // pred_check
                _
              $region57: #{tpu_custom_call.1} parent=43 // pred_check_branch
                %422 = sbr.rel (0) target = $region59
              $region58: #{tpu_custom_call.1} parent=43 // pred_region
                loop: start=0, step=1, limit=1
                $region60: #{tpu_custom_call.1} parent=58 // loop_pre_header
                  _
                $region61: #{tpu_custom_call.1} parent=58 // loop_header
                  %s424 = sphi 0, %s428
                  %p425 = scmp.ge.s32.totalorder %s424, 1
                  %s429 = sphi %s396, %s396
                  %s430 = sphi %s379, %s379
                $region62: #{tpu_custom_call.1} parent=58 // loop_header_branch
                  %427 = sbr.rel (%p425) target = $region66
                $region63: #{tpu_custom_call.1} parent=58 // loop_body
                  %v431 = vld [vmem:[%s429] sm:$0xff]
                  %432 = vst [vmem:[%s430] sm:$0xff] %v431
                  %v433 = vld [vmem:[%s429 + $0x10] sm:$0xff]
                  %434 = vst [vmem:[%s430 + $0x8] sm:$0xff] %v433
                  %v435 = vld [vmem:[%s429 + $0x20] sm:$0xff]
                  %436 = vst [vmem:[%s430 + $0x10] sm:$0xff] %v435
                  %v437 = vld [vmem:[%s429 + $0x30] sm:$0xff]
                  %438 = vst [vmem:[%s430 + $0x18] sm:$0xff] %v437
                $region64: #{tpu_custom_call.1} parent=58 // loop_footer
                  %s428 = sadd.s32 1, %s424
                $region65: #{tpu_custom_call.1} parent=58 // loop_footer_branch
                  %423 = sbr.rel target = $region61
                $region66: #{tpu_custom_call.1} parent=58 // loop_exit
                  _
              $region59: #{tpu_custom_call.1} parent=43 // pred_fallthru
                _
              // Predicated region
              $region67: #{tpu_custom_call.1} parent=43 // pred_check
                _
              $region68: #{tpu_custom_call.1} parent=43 // pred_check_branch
                %440 = sbr.rel target = $region70
              $region69: #{tpu_custom_call.1} parent=43 // pred_region
                _
              $region70: #{tpu_custom_call.1} parent=43 // pred_fallthru
                _
            $region44: #{tpu_custom_call.1} parent=39 // pred_fallthru
              _
            // Predicated region
            $region45: #{tpu_custom_call.1} parent=39 // pred_check
              _
            $region46: #{tpu_custom_call.1} parent=39 // pred_check_branch
              %402 = sbr.rel target = $region48
            $region47: #{tpu_custom_call.1} parent=39 // pred_region
              %s404 = ssub.s32 256, 1
              loop: start=0, step=1, limit=1
              $region49: #{tpu_custom_call.1} parent=47 // loop_pre_header
                _
              $region50: #{tpu_custom_call.1} parent=47 // loop_header
                %s406 = sphi 0, %s410
                %p407 = scmp.ge.s32.totalorder %s406, 1
                %s411 = sphi %s396, %s396
                %s412 = sphi %s379, %s379
              $region51: #{tpu_custom_call.1} parent=47 // loop_header_branch
                %409 = sbr.rel (%p407) target = $region55
              $region52: #{tpu_custom_call.1} parent=47 // loop_body
                %v413 = vld [vmem:[%s411] sm:%s404]
                %414 = vst [vmem:[%s412] sm:%s404] %v413
                %v415 = vld [vmem:[%s411 + $0x10] sm:%s404]
                %416 = vst [vmem:[%s412 + $0x8] sm:%s404] %v415
                %v417 = vld [vmem:[%s411 + $0x20] sm:%s404]
                %418 = vst [vmem:[%s412 + $0x10] sm:%s404] %v417
                %v419 = vld [vmem:[%s411 + $0x30] sm:%s404]
                %420 = vst [vmem:[%s412 + $0x18] sm:%s404] %v419
              $region53: #{tpu_custom_call.1} parent=47 // loop_footer
                %s410 = sadd.s32 1, %s406
              $region54: #{tpu_custom_call.1} parent=47 // loop_footer_branch
                %405 = sbr.rel target = $region50
              $region55: #{tpu_custom_call.1} parent=47 // loop_exit
                _
            $region48: #{tpu_custom_call.1} parent=39 // pred_fallthru
              _
          $region40: #{tpu_custom_call.1} parent=35 // pred_fallthru
            _
          %441 = vnop
        $region36: #{tpu_custom_call.1} parent=19 // pred_fallthru
          _
      $region20: #{tpu_custom_call.1} parent=5 // pred_fallthru
        _
      %p442 = scmp.le.s32.totalorder 1, %s14
      %p443 = scmp.lt.s32.totalorder %s14, 5
      %p444 = pnand %p442, %p443
      %p445 = pneg %p444
      // Predicated region
      $region71: #{tpu_custom_call.1} parent=5 // pred_check
        _
      $region72: #{tpu_custom_call.1} parent=5 // pred_check_branch
        %447 = sbr.rel (%p444) target = $region74
      $region73: #{tpu_custom_call.1} parent=5 // pred_region
        %s448 = ssub.s32 %s14, 1
        %s449 = sand.u32 %s207, 1
        %s450 = sand.u32 %s207, 1
        %s451 = smul.addr %s450, 32
        %s452 = scalar_lea.vmem [#allocation2], %s451
        // Predicated region
        $region75: #{tpu_custom_call.1} parent=73 // pred_check
          %p453 = pneg %p220
        $region76: #{tpu_custom_call.1} parent=73 // pred_check_branch
          %455 = sbr.rel (%p453) target = $region78
        $region77: #{tpu_custom_call.1} parent=73 // pred_region
          _
        $region78: #{tpu_custom_call.1} parent=73 // pred_fallthru
          _
        %s456 = smul.u32 2, %s23
        %p457 = scmp.lt.s32.totalorder %s456, 3
        %s458 = scalar_select %p457, %s456, 3
        %s459 = smul.addr %s458, 8
        %s460 = scalar_lea.vmem %s0, %s459
        %p461 = pneg %p52
        %p462 = pneg %p49
        %p463 = scmp.lt.s32.totalorder %s23, 0
        %s464 = ssub.s32 0, %s23
        %s465 = scalar_select %p463, %s464, %s23
        %s466 = sand.u32 %s465, 1
        %s467 = ssub.s32 0, %s466
        %s468 = scalar_select %p463, %s467, %s466
        %p469 = scmp.ne.s32.totalorder %s468, 0
        %p470 = scmp.lt.s32.totalorder %s468, 0
        %p471 = pnand %p470, %p469
        %p472 = pneg %p471
        %s473 = sadd.s32 %s468, 2
        %s474 = scalar_select %p472, %s473, %s468
        %p475 = scmp.eq.s32.totalorder %s474, 0
        %s476 = ssub.s32 1, %s24
        %s477 = scalar_select %p475, %s24, %s476
        %s478 = smul.u32 16, %s477
        %p479 = scmp.lt.s32.totalorder %s478, 31
        %s480 = scalar_select %p479, %s478, 31
        %s481 = smul.addr %s480, 8
        %s482 = scalar_lea.vmem %s1, %s481
        %p483 = pneg %p108
        %p484 = pneg %p105
        %p485 = scmp.lt.s32.totalorder %s23, 0
        %s486 = ssub.s32 0, %s23
        %s487 = scalar_select %p485, %s486, %s23
        %s488 = sand.u32 %s487, 1
        %s489 = ssub.s32 0, %s488
        %s490 = scalar_select %p485, %s489, %s488
        %p491 = scmp.ne.s32.totalorder %s490, 0
        %p492 = scmp.lt.s32.totalorder %s490, 0
        %p493 = pnand %p492, %p491
        %p494 = pneg %p493
        %s495 = sadd.s32 %s490, 2
        %s496 = scalar_select %p494, %s495, %s490
        %p497 = scmp.eq.s32.totalorder %s496, 0
        %s498 = ssub.s32 1, %s24
        %s499 = scalar_select %p497, %s24, %s498
        %p500 = scmp.lt.s32.totalorder %s499, 1
        %s501 = scalar_select %p500, %s499, 1
        %s502 = scalar_lea.vmem %s2, %s501
        %p503 = pneg %p164
        %p504 = pneg %p161
        %s505 = sand.u32 %s207, 1
        %s506 = sand.u32 %s207, 1
        %s507 = smul.addr %s506, 32
        %s508 = scalar_lea.vmem [#allocation2], %s507
        %p509 = pneg %p220
        %p510 = pneg %p217
        %p511 = pneg %p241
        %p512 = pneg %p238
        %p513 = pneg %p267
        %p514 = pneg %p264
        %s515 = sand.u32 %s254, 1
        %s516 = scalar_lea.sflag [#allocation4], %s515
        %s517 = sand.u32 %s254, 1
        %s518 = smul.addr %s517, 16
        %s519 = scalar_lea.vmem [#allocation3], %s518
        %s520 = smul.u32 2, %s23
        %p521 = scmp.lt.s32.totalorder %s520, 3
        %s522 = scalar_select %p521, %s520, 3
        %s523 = smul.addr %s522, 8
        %s524 = scalar_lea.vmem %s0, %s523
        %s525 = smul.u32 2, %s23
        %p526 = scmp.lt.s32.totalorder %s23, 0
        %s527 = ssub.s32 0, %s23
        %s528 = scalar_select %p526, %s527, %s23
        %s529 = sand.u32 %s528, 1
        %s530 = ssub.s32 0, %s529
        %s531 = scalar_select %p526, %s530, %s529
        %p532 = scmp.ne.s32.totalorder %s531, 0
        %p533 = scmp.lt.s32.totalorder %s531, 0
        %p534 = pnand %p533, %p532
        %p535 = pneg %p534
        %s536 = sadd.s32 %s531, 2
        %s537 = scalar_select %p535, %s536, %s531
        %p538 = scmp.eq.s32.totalorder %s537, 0
        %s539 = ssub.s32 1, %s24
        %s540 = scalar_select %p538, %s24, %s539
        %s541 = smul.u32 16, %s540
        %p542 = scmp.lt.s32.totalorder %s541, 31
        %s543 = scalar_select %p542, %s541, 31
        %s544 = smul.addr %s543, 8
        %s545 = scalar_lea.vmem %s1, %s544
        %p546 = scmp.lt.s32.totalorder %s23, 0
        %s547 = ssub.s32 0, %s23
        %s548 = scalar_select %p546, %s547, %s23
        %s549 = sand.u32 %s548, 1
        %s550 = ssub.s32 0, %s549
        %s551 = scalar_select %p546, %s550, %s549
        %p552 = scmp.ne.s32.totalorder %s551, 0
        %p553 = scmp.lt.s32.totalorder %s551, 0
        %p554 = pnand %p553, %p552
        %p555 = pneg %p554
        %s556 = sadd.s32 %s551, 2
        %s557 = scalar_select %p555, %s556, %s551
        %p558 = scmp.eq.s32.totalorder %s557, 0
        %s559 = ssub.s32 1, %s24
        %s560 = scalar_select %p558, %s24, %s559
        %s561 = smul.u32 16, %s560
        %p562 = scmp.lt.s32.totalorder %s23, 0
        %s563 = ssub.s32 0, %s23
        %s564 = scalar_select %p562, %s563, %s23
        %s565 = sand.u32 %s564, 1
        %s566 = ssub.s32 0, %s565
        %s567 = scalar_select %p562, %s566, %s565
        %p568 = scmp.ne.s32.totalorder %s567, 0
        %p569 = scmp.lt.s32.totalorder %s567, 0
        %p570 = pnand %p569, %p568
        %p571 = pneg %p570
        %s572 = sadd.s32 %s567, 2
        %s573 = scalar_select %p571, %s572, %s567
        %p574 = scmp.eq.s32.totalorder %s573, 0
        %s575 = ssub.s32 1, %s24
        %s576 = scalar_select %p574, %s24, %s575
        %p577 = scmp.lt.s32.totalorder %s576, 1
        %s578 = scalar_select %p577, %s576, 1
        %s579 = scalar_lea.vmem %s2, %s578
        %p580 = scmp.lt.s32.totalorder %s23, 0
        %s581 = ssub.s32 0, %s23
        %s582 = scalar_select %p580, %s581, %s23
        %s583 = sand.u32 %s582, 1
        %s584 = ssub.s32 0, %s583
        %s585 = scalar_select %p580, %s584, %s583
        %p586 = scmp.ne.s32.totalorder %s585, 0
        %p587 = scmp.lt.s32.totalorder %s585, 0
        %p588 = pnand %p587, %p586
        %p589 = pneg %p588
        %s590 = sadd.s32 %s585, 2
        %s591 = scalar_select %p589, %s590, %s585
        %p592 = scmp.eq.s32.totalorder %s591, 0
        %s593 = ssub.s32 1, %s24
        %s594 = scalar_select %p592, %s24, %s593
        %p595 = scmp.lt.s32.totalorder %s23, 0
        %s596 = ssub.s32 0, %s23
        %s597 = scalar_select %p595, %s596, %s23
        %s598 = sand.u32 %s597, 1
        %s599 = ssub.s32 0, %s598
        %s600 = scalar_select %p595, %s599, %s598
        %p601 = scmp.ne.s32.totalorder %s600, 0
        %p602 = scmp.lt.s32.totalorder %s600, 0
        %p603 = pnand %p602, %p601
        %p604 = pneg %p603
        %s605 = sadd.s32 %s600, 2
        %s606 = scalar_select %p604, %s605, %s600
        %p607 = scmp.eq.s32.totalorder %s606, 0
        %s608 = ssub.s32 1, %s24
        %s609 = scalar_select %p607, %s24, %s608
        %s610 = smul.u32 2, %s23
        %p611 = scmp.eq.s32.totalorder %s24, 0
        // Predicated region
        $region79: #{tpu_custom_call.1} parent=73 // pred_check
          %p612 = pneg %p611
        $region80: #{tpu_custom_call.1} parent=73 // pred_check_branch
          %614 = sbr.rel (%p612) target = $region82
        $region81: #{tpu_custom_call.1} parent=73 // pred_region
          %vm615 = vcmask 261120
          %616 = vst.msk [vmem:[%s519] sm:$0xff] %vm615, 0.0
          %617 = vst.msk [vmem:[%s519 + $0x8] sm:$0xff] %vm615, 0.0
        $region82: #{tpu_custom_call.1} parent=73 // pred_fallthru
          _
        %v618 = vld [vmem:[%s519] sm:$0xff]
        %v619 = vld [vmem:[%s519 + $0x8] sm:$0xff]
        %v620 = vld [vmem:[%s524] sm:$0xff]
        %v621 = vld [vmem:[%s524 + $0x8] sm:$0xff]
        %v622 = vld [vmem:[%s545] sm:$0xff]
        %v623 = vld [vmem:[%s545 + $0x8] sm:$0xff]
        %v624 = vld [vmem:[%s545 + $0x10] sm:$0xff]
        %v625 = vld [vmem:[%s545 + $0x18] sm:$0xff]
        %v626 = vld [vmem:[%s545 + $0x20] sm:$0xff]
        %v627 = vld [vmem:[%s545 + $0x28] sm:$0xff]
        %v628 = vld [vmem:[%s545 + $0x30] sm:$0xff]
        %v629 = vld [vmem:[%s545 + $0x38] sm:$0xff]
        %v630 = vld [vmem:[%s545 + $0x40] sm:$0xff]
        %v631 = vld [vmem:[%s545 + $0x48] sm:$0xff]
        %v632 = vld [vmem:[%s545 + $0x50] sm:$0xff]
        %v633 = vld [vmem:[%s545 + $0x58] sm:$0xff]
        %v634 = vld [vmem:[%s545 + $0x60] sm:$0xff]
        %v635 = vld [vmem:[%s545 + $0x68] sm:$0xff]
        %v636 = vld [vmem:[%s545 + $0x70] sm:$0xff]
        %v637 = vld [vmem:[%s545 + $0x78] sm:$0xff]
        %v638 = vld [vmem:[%s579] sm:$0x1]
        %v640 = vlaneseq
        %v641 = vshrl.u32 %v640, 7
        %v642 = vsub.s32 0, %v641
        %v643 = vrot.slane %v638, %v642
        %vm645 = vcmask 261120
        %v647 = vsel %vm645, %v620, 0
        %v650 = vsel %vm645, %v621, 0
        %v653 = vsel %vm645, %v622, 0
        %v656 = vsel %vm645, %v623, 0
        %v659 = vsel %vm645, %v624, 0
        %v662 = vsel %vm645, %v625, 0
        %v665 = vsel %vm645, %v626, 0
        %v668 = vsel %vm645, %v627, 0
        %v671 = vsel %vm645, %v628, 0
        %v674 = vsel %vm645, %v629, 0
        %v677 = vsel %vm645, %v630, 0
        %v680 = vsel %vm645, %v631, 0
        %v683 = vsel %vm645, %v632, 0
        %v686 = vsel %vm645, %v633, 0
        %v689 = vsel %vm645, %v634, 0
        %v692 = vsel %vm645, %v635, 0
        %v695 = vsel %vm645, %v636, 0
        %v698 = vsel %vm645, %v637, 0
        %700 = vmatprep.subr.mxu0 0.0
        %701 = vmatpush1.xpose.msra.mxu0 %v698
        %702 = vmatprep.subr.mxu0 0.0
        %703 = vmatpush1.xpose.msra.mxu0 %v695
        %704 = vmatprep.subr.mxu0 0.0
        %705 = vmatpush1.xpose.msra.mxu0 %v692
        %706 = vmatprep.subr.mxu0 0.0
        %707 = vmatpush1.xpose.msra.mxu0 %v689
        %708 = vmatprep.subr.mxu0 0.0
        %709 = vmatpush1.xpose.msra.mxu0 %v686
        %710 = vmatprep.subr.mxu0 0.0
        %711 = vmatpush1.xpose.msra.mxu0 %v683
        %712 = vmatprep.subr.mxu0 0.0
        %713 = vmatpush1.xpose.msra.mxu0 %v680
        %714 = vmatprep.subr.mxu0 0.0
        %715 = vmatpush1.xpose.msra.mxu0 %v677
        %716 = vmatprep.subr.mxu0 0.0
        %717 = vmatpush1.xpose.msra.mxu0 %v674
        %718 = vmatprep.subr.mxu0 0.0
        %719 = vmatpush1.xpose.msra.mxu0 %v671
        %720 = vmatprep.subr.mxu0 0.0
        %721 = vmatpush1.xpose.msra.mxu0 %v668
        %722 = vmatprep.subr.mxu0 0.0
        %723 = vmatpush1.xpose.msra.mxu0 %v665
        %724 = vmatprep.subr.mxu0 0.0
        %725 = vmatpush1.xpose.msra.mxu0 %v662
        %726 = vmatprep.subr.mxu0 0.0
        %727 = vmatpush1.xpose.msra.mxu0 %v659
        %728 = vmatprep.subr.mxu0 0.0
        %729 = vmatpush1.xpose.msra.mxu0 %v656
        %730 = vmatprep.subr.mxu0 0.0
        %731 = vmatpush1.xpose.msra.mxu0 %v653
        %732 = vmatprep.subr.mxu0 0.0
        %733 = vmatpush2.xpose.msra.mxu0 0.0
        %734 = vmatprep.subr.mxu0 0.0
        %735 = vmatpush2.xpose.msra.mxu0 0.0
        %736 = vmatprep.subr.mxu0 0.0
        %737 = vmatpush2.xpose.msra.mxu0 0.0
        %738 = vmatprep.subr.mxu0 0.0
        %739 = vmatpush2.xpose.msra.mxu0 0.0
        %740 = vmatprep.subr.mxu0 0.0
        %741 = vmatpush2.xpose.msra.mxu0 0.0
        %742 = vmatprep.subr.mxu0 0.0
        %743 = vmatpush2.xpose.msra.mxu0 0.0
        %744 = vmatprep.subr.mxu0 0.0
        %745 = vmatpush2.xpose.msra.mxu0 0.0
        %746 = vmatprep.subr.mxu0 0.0
        %747 = vmatpush2.xpose.msra.mxu0 0.0
        %748 = vmatprep.subr.mxu0 0.0
        %749 = vmatpush2.xpose.msra.mxu0 0.0
        %750 = vmatprep.subr.mxu0 0.0
        %751 = vmatpush2.xpose.msra.mxu0 0.0
        %752 = vmatprep.subr.mxu0 0.0
        %753 = vmatpush2.xpose.msra.mxu0 0.0
        %754 = vmatprep.subr.mxu0 0.0
        %755 = vmatpush2.xpose.msra.mxu0 0.0
        %756 = vmatprep.subr.mxu0 0.0
        %757 = vmatpush2.xpose.msra.mxu0 0.0
        %758 = vmatprep.subr.mxu0 0.0
        %759 = vmatpush2.xpose.msra.mxu0 0.0
        %760 = vmatprep.subr.mxu0 0.0
        %761 = vmatpush2.xpose.msra.mxu0 0.0
        %762 = vmatprep.subr.mxu0 0.0
        %763 = vmatpush2.xpose.msra.mxu0 0.0
        %764 = vmatprep.mubr.f32.mxu0 0.0
        %765 = vmatmul.mubr.f32.gmra.mxu0 %v647
        %v766 = vpop.f32.mrf.mxu0
        %v767 = vadd.f32 %v643, %v766
        %v768 = vpop.f32.mrf.mxu0
        %769 = vmatprep.mubr.f32.mxu0 0.0
        %770 = vmatmul.mubr.f32.gmra.mxu0 %v650
        %v771 = vpop.f32.mrf.mxu0
        %v772 = vadd.f32 %v643, %v771
        %v773 = vpop.f32.mrf.mxu0
        %774 = vdwg.mxu0
        %v775 = vmax.f32 %v767, 0.0
        %v776 = vmax.f32 %v772, 0.0
        %v777 = vld [vmem:[%s452] sm:$0xff]
        %v778 = vld [vmem:[%s452 + $0x8] sm:$0xff]
        %v779 = vld [vmem:[%s452 + $0x10] sm:$0xff]
        %v780 = vld [vmem:[%s452 + $0x18] sm:$0xff]
        %781 = vmatprep.subr.mxu0 0.0
        %782 = vmatpush1.xpose.msra.mxu0 0.0
        %783 = vmatprep.subr.mxu0 0.0
        %784 = vmatpush1.xpose.msra.mxu0 0.0
        %785 = vmatprep.subr.mxu0 0.0
        %786 = vmatpush1.xpose.msra.mxu0 0.0
        %787 = vmatprep.subr.mxu0 0.0
        %788 = vmatpush1.xpose.msra.mxu0 0.0
        %789 = vmatprep.subr.mxu0 0.0
        %790 = vmatpush1.xpose.msra.mxu0 0.0
        %791 = vmatprep.subr.mxu0 0.0
        %792 = vmatpush1.xpose.msra.mxu0 0.0
        %793 = vmatprep.subr.mxu0 0.0
        %794 = vmatpush1.xpose.msra.mxu0 0.0
        %795 = vmatprep.subr.mxu0 0.0
        %796 = vmatpush1.xpose.msra.mxu0 0.0
        %797 = vmatprep.subr.mxu0 0.0
        %798 = vmatpush1.xpose.msra.mxu0 0.0
        %799 = vmatprep.subr.mxu0 0.0
        %800 = vmatpush1.xpose.msra.mxu0 0.0
        %801 = vmatprep.subr.mxu0 0.0
        %802 = vmatpush1.xpose.msra.mxu0 0.0
        %803 = vmatprep.subr.mxu0 0.0
        %804 = vmatpush1.xpose.msra.mxu0 0.0
        %805 = vmatprep.subr.mxu0 0.0
        %806 = vmatpush1.xpose.msra.mxu0 %v780
        %807 = vmatprep.subr.mxu0 0.0
        %808 = vmatpush1.xpose.msra.mxu0 %v779
        %809 = vmatprep.subr.mxu0 0.0
        %810 = vmatpush1.xpose.msra.mxu0 %v778
        %811 = vmatprep.subr.mxu0 0.0
        %812 = vmatpush1.xpose.msra.mxu0 %v777
        %813 = vmatprep.subr.mxu0 0.0
        %814 = vmatpush2.xpose.msra.mxu0 0.0
        %815 = vmatprep.subr.mxu0 0.0
        %816 = vmatpush2.xpose.msra.mxu0 0.0
        %817 = vmatprep.subr.mxu0 0.0
        %818 = vmatpush2.xpose.msra.mxu0 0.0
        %819 = vmatprep.subr.mxu0 0.0
        %820 = vmatpush2.xpose.msra.mxu0 0.0
        %821 = vmatprep.subr.mxu0 0.0
        %822 = vmatpush2.xpose.msra.mxu0 0.0
        %823 = vmatprep.subr.mxu0 0.0
        %824 = vmatpush2.xpose.msra.mxu0 0.0
        %825 = vmatprep.subr.mxu0 0.0
        %826 = vmatpush2.xpose.msra.mxu0 0.0
        %827 = vmatprep.subr.mxu0 0.0
        %828 = vmatpush2.xpose.msra.mxu0 0.0
        %829 = vmatprep.subr.mxu0 0.0
        %830 = vmatpush2.xpose.msra.mxu0 0.0
        %831 = vmatprep.subr.mxu0 0.0
        %832 = vmatpush2.xpose.msra.mxu0 0.0
        %833 = vmatprep.subr.mxu0 0.0
        %834 = vmatpush2.xpose.msra.mxu0 0.0
        %835 = vmatprep.subr.mxu0 0.0
        %836 = vmatpush2.xpose.msra.mxu0 0.0
        %837 = vmatprep.subr.mxu0 0.0
        %838 = vmatpush2.xpose.msra.mxu0 0.0
        %839 = vmatprep.subr.mxu0 0.0
        %840 = vmatpush2.xpose.msra.mxu0 0.0
        %841 = vmatprep.subr.mxu0 0.0
        %842 = vmatpush2.xpose.msra.mxu0 0.0
        %843 = vmatprep.subr.mxu0 0.0
        %844 = vmatpush2.xpose.msra.mxu0 0.0
        %845 = vmatprep.mubr.f32.mxu0 0.0
        %846 = vmatmul.mubr.f32.gmra.mxu0 %v775
        %v847 = vpop.f32.mrf.mxu0
        %v848 = vadd.f32 0.0, %v847
        %v849 = vpop.f32.mrf.mxu0
        %850 = vmatprep.mubr.f32.mxu0 0.0
        %851 = vmatmul.mubr.f32.gmra.mxu0 %v776
        %v852 = vpop.f32.mrf.mxu0
        %v853 = vadd.f32 0.0, %v852
        %v854 = vpop.f32.mrf.mxu0
        %855 = vdwg.mxu0
        %v856 = vadd.f32 %v618, %v848
        %v857 = vadd.f32 %v619, %v853
        %858 = vst.msk [vmem:[%s519] sm:$0xff] %vm645, %v856
        %859 = vst.msk [vmem:[%s519 + $0x8] sm:$0xff] %vm645, %v857
        %p860 = scmp.eq.s32.totalorder %s24, 1
        // Predicated region
        $region83: #{tpu_custom_call.1} parent=73 // pred_check
          %p861 = pneg %p860
        $region84: #{tpu_custom_call.1} parent=73 // pred_check_branch
          %863 = sbr.rel (%p861) target = $region86
        $region85: #{tpu_custom_call.1} parent=73 // pred_region
          %v864 = vld [vmem:[%s519] sm:$0xff]
          %v865 = vld [vmem:[%s519 + $0x8] sm:$0xff]
          %v866 = vld [vmem:[%s4] sm:$0x1]
          %v868 = vlaneseq
          %v869 = vshrl.u32 %v868, 7
          %v870 = vsub.s32 0, %v869
          %v871 = vrot.slane %v866, %v870
          %v873 = vadd.f32 %v864, %v871
          %v874 = vadd.f32 %v865, %v871
          %875 = vst.msk [vmem:[%s519] sm:$0xff] %vm645, %v873
          %876 = vst.msk [vmem:[%s519 + $0x8] sm:$0xff] %vm645, %v874
        $region86: #{tpu_custom_call.1} parent=73 // pred_fallthru
          _
        %s877 = sand.u32 %s254, 1
        %s878 = scalar_lea.sflag [#allocation4], %s877
        %s879 = sand.u32 %s254, 1
        %s880 = smul.addr %s879, 16
        %s881 = scalar_lea.vmem [#allocation3], %s880
        // Predicated region
        $region87: #{tpu_custom_call.1} parent=73 // pred_check
          %p882 = pneg %p264
        $region88: #{tpu_custom_call.1} parent=73 // pred_check_branch
          %884 = sbr.rel (%p882) target = $region90
        $region89: #{tpu_custom_call.1} parent=73 // pred_region
          %s885 = smul.u32 2, %s23
          %s887 = ssub.s32 256, 256
          %888 = vsyncadd %s878, %s887
          %s889 = smul.addr %s885, 128
          %s890 = scalar_lea.hbm %s5, %s889
          %s891 = sshll.u32 %s881, 4
          %s892 = int_to_ptr.vmem [resolvable:$true] %s891
          %897 = dma.vmem_to_hbm [thread:$0]  %s892, 256, %s890, %s878, 128, 128, 8
        $region90: #{tpu_custom_call.1} parent=73 // pred_fallthru
          _
      $region74: #{tpu_custom_call.1} parent=5 // pred_fallthru
        _
      %p898 = scmp.le.s32.totalorder 2, %s14
      // Predicated region
      $region91: #{tpu_custom_call.1} parent=5 // pred_check
        %p899 = pneg %p898
      $region92: #{tpu_custom_call.1} parent=5 // pred_check_branch
        %901 = sbr.rel (%p899) target = $region94
      $region93: #{tpu_custom_call.1} parent=5 // pred_region
        %s902 = ssub.s32 %s14, 2
        // Predicated region
        $region95: #{tpu_custom_call.1} parent=93 // pred_check
          %p903 = pneg %p270
        $region96: #{tpu_custom_call.1} parent=93 // pred_check_branch
          %905 = sbr.rel (%p903) target = $region98
        $region97: #{tpu_custom_call.1} parent=93 // pred_region
          %s906 = sand.u32 %s255, 1
          %s907 = scalar_lea.sflag [#allocation4], %s906
          %s908 = sand.u32 %s255, 1
          %s909 = smul.addr %s908, 16
          %s910 = scalar_lea.vmem [#allocation3], %s909
          %911 = dma.done %s907, 256
        $region98: #{tpu_custom_call.1} parent=93 // pred_fallthru
          _
      $region94: #{tpu_custom_call.1} parent=5 // pred_fallthru
        _
    $region6: #{tpu_custom_call.1} parent=1 // loop_footer
      %s18 = sadd.s32 1, %s14
    $region7: #{tpu_custom_call.1} parent=1 // loop_footer_branch
      %13 = sbr.rel target = $region3
    $region8: #{tpu_custom_call.1} parent=1 // loop_exit
      _
    %912 = vsyncpa [#allocation4], 1
    %s913 = scalar_lea.sflag [#allocation4], 1
    %914 = vsyncpa %s913, 1

</llo_original>
